<compile_context>
chip_gen: v5e
topology: v5e:2x2
jax: 0.10.0
libtpu: 0.0.40
codegen_flags: <defaults>
</compile_context>

<pallas_src>
import jax
import jax.numpy as jnp
from jax.experimental import pallas as pl
from jax.experimental.pallas import tpu as pltpu

# Per-tile byte budget. 4x (double-buffered input + output) = ~8 MiB live VMEM,
# inside every generation's default scoped limit without any vmem_limit_bytes.
_TILE_BYTES = 2 * 1024 * 1024


def _copy_kernel(x_ref, o_ref):
    # Pure lane-dense tile copy; the binding resource is the DMA/store path.
    o_ref[...] = x_ref[...]


def _round_down(x, m):
    return (x // m) * m


def _choose_tiles(B, C, itemsize):
    """Byte-budgeted, alignment-safe tile sizes for a (B, C) copy."""
    # Lane (last) dim first: large multiple of 128 (unmasked vst), capped so a
    # single 8-row sublane slab still fits the byte budget.
    if C <= 128:
        bC = C  # full dim (allowed even if not 128-aligned)
    else:
        cap = max(128, _round_down(_TILE_BYTES // (8 * itemsize), 128))
        bC = min(cap, max(128, _round_down(C, 128)))
    # Sublane dim: fill the remaining budget with a multiple of 8.
    if B <= 8:
        bB = B  # full dim
    else:
        cap = max(8, _round_down(_TILE_BYTES // (bC * itemsize), 8))
        bB = min(cap, max(8, _round_down(B, 8)))
    # v7x: ensure at least 2 grid steps on a parallel axis so both TensorCores
    # (and DMA engines) share the copy. Harmless on single-TC v5e/v6e.
    if pl.cdiv(B, bB) * pl.cdiv(C, bC) == 1:
        if bC >= 256:
            bC = _round_down(bC // 2, 128)
        elif bB >= 16:
            bB = _round_down(bB // 2, 8)
    return bB, bC


def _tiled_copy_2d(x, donate_input=False):
    """Materialized, HBM-roofline (B, C) copy via a gridded lane-dense kernel."""
    B, C = x.shape
    bB, bC = _choose_tiles(B, C, x.dtype.itemsize)
    grid = (pl.cdiv(B, bB), pl.cdiv(C, bC))
    return pl.pallas_call(
        _copy_kernel,
        out_shape=jax.ShapeDtypeStruct((B, C), x.dtype),
        grid=grid,
        in_specs=[pl.BlockSpec((bB, bC), lambda i, j: (i, j))],
        out_specs=pl.BlockSpec((bB, bC), lambda i, j: (i, j)),
        compiler_params=pltpu.CompilerParams(
            dimension_semantics=("parallel", "parallel"),
        ),
        input_output_aliases=({0: 0} if donate_input else {}),
    )(x)


def flatten(x, materialize=False, donate_input=False):
    """Pallas/JAX implementation of VLAD-BuFF Flatten.forward.

    Default path is zero-copy (metadata-only reshape), matching PyTorch's
    view semantics. Set materialize=True to force a Pallas copy kernel.
    """
    if x.ndim > 2:
        assert all(int(d) == 1 for d in x.shape[2:]), (
            f"expected all trailing dims of 1, got {x.shape[2:]}"
        )
        B, C = x.shape[0], x.shape[1]
        x2 = jnp.reshape(x, (B, C))  # metadata-only squeeze
        if materialize:
            return _tiled_copy_2d(x2, donate_input=donate_input)
        return x2
    else:
        # PyTorch returns the input tensor itself: no kernel, no copy.
        return x


if __name__ == "__main__":
    key = jax.random.PRNGKey(0)
    k1, k2, k3, k4 = jax.random.split(key, 4)

    # 4-D case, tiny shape: zero-copy default path AND tiny full-block kernel path.
    x4 = jax.random.normal(k1, (2, 4, 1, 1), dtype=jnp.float32)
    ref4 = x4[:, :, 0, 0]
    y4 = jax.block_until_ready(flatten(x4))
    assert y4.shape == (2, 4) and jnp.allclose(y4, ref4), "4D flatten mismatch (view)"
    y4k = jax.block_until_ready(flatten(x4, materialize=True))
    assert y4k.shape == (2, 4) and jnp.allclose(y4k, ref4), "4D flatten mismatch (kernel, tiny)"

    # 4-D case, lane-aligned shape exercising the tiled kernel (grid split for v7x).
    x4b = jax.random.normal(k2, (8, 4096, 1, 1), dtype=jnp.float32)
    ref4b = x4b[:, :, 0, 0]
    y4b = jax.block_until_ready(flatten(x4b, materialize=True))
    assert y4b.shape == (8, 4096) and jnp.allclose(y4b, ref4b), "4D flatten mismatch (tiled)"

    # 4-D case, UNALIGNED dims exercising the cdiv / ragged-boundary path.
    x4c = jax.random.normal(k3, (10, 300, 1, 1), dtype=jnp.float32)
    ref4c = x4c[:, :, 0, 0]
    y4c = jax.block_until_ready(flatten(x4c, materialize=True))
    assert y4c.shape == (10, 300) and jnp.allclose(y4c, ref4c), "4D flatten mismatch (ragged)"

    # 2-D case: identity passthrough (no kernel, no copy).
    x2 = jax.random.normal(k4, (2, 8), dtype=jnp.float32)
    y2 = jax.block_until_ready(flatten(x2))
    assert y2.shape == (2, 8) and jnp.allclose(y2, x2), "2D passthrough mismatch"

    print("KERNEL_OK")
</pallas_src>

<mosaic_0001>
module attributes {stable_mosaic.version = 11 : i64} {
  func.func @_copy_kernel(%arg0: i32, %arg1: i32, %arg2: memref<2x4xf32, #tpu.memory_space<vmem>>, %arg3: memref<2x4xf32, #tpu.memory_space<vmem>>) attributes {dimension_semantics = [#tpu.dimension_semantics<parallel>, #tpu.dimension_semantics<parallel>], iteration_bounds = array<i64: 1, 1>, scalar_prefetch = 0 : i64, scratch_operands = 0 : i64, tpu.core_type = #tpu.core_type<tc>, window_params = [{transform_indices = @transform_0, window_bounds = array<i64: 2, 4>}, {transform_indices = @transform_1, window_bounds = array<i64: 2, 4>}]} {
    %c0 = arith.constant 0 : index
    %c0_0 = arith.constant 0 : index
    %0 = vector.load %arg2[%c0, %c0_0] : memref<2x4xf32, #tpu.memory_space<vmem>>, vector<2x4xf32>
    %c0_1 = arith.constant 0 : index
    %c0_2 = arith.constant 0 : index
    %1 = vector.load %arg3[%c0_1, %c0_2] : memref<2x4xf32, #tpu.memory_space<vmem>>, vector<2x4xf32>
    tpu.vector_store %arg3[%c0_1, %c0_2], %0 {strides = array<i32>} : memref<2x4xf32, #tpu.memory_space<vmem>>, vector<2x4xf32>,
    return
  }
  func.func @transform_0(%arg0: i32, %arg1: i32) -> (i32, i32) {
    %c0_i32 = arith.constant 0 : i32
    return %arg0, %arg1 : i32, i32
  }
  func.func @transform_1(%arg0: i32, %arg1: i32) -> (i32, i32) {
    %c0_i32 = arith.constant 0 : i32
    return %arg0, %arg1 : i32, i32
  }
}

</mosaic_0001>

<llo_original>
// kernel: tpu_custom_call.1
$region0: #{tpu_custom_call.1}
  #allocation0 [shape = 'u32[]', space=smem, size = 0x4, offset = 0x4, fixed_abs, tag = 'smem constant byte address 0x4 - core index']
  #allocation1 [shape = 'u32[72,128]{1,0:T(1,128)}', space=vmem, size = 0x9000, scoped, tag = 'internal scratch']
  %s0 = inlined_call_operand.hbm [shape: f32[2,4], index: 0, kind: input, shape index: {}]
  %s1 = inlined_call_operand.hbm [shape: f32[2,4], index: 1, kind: output, shape index: {}]
  %s2 = sld [smem:[#allocation0]]
  $region18: #{tpu_custom_call.1} parent=0
    _
  %s4 = ssub.s32 1, %s2
  %s5 = scalar_select 0, %s4, %s2
  $region1: #{tpu_custom_call.1} parent=0
    #allocation2 [shape = 'u8[1024]{0}', space=vmem, size = 0x400, scoped, tag = 'input window, operand 0, single buffered']
    #allocation3 [shape = 's32[1]{0}', space=sflag, size = 0x4, scoped, tag = 'scoped memory for tpu_custom_call.1']
    #allocation4 [shape = 's32[1]{0}', space=sflag, size = 0x4, scoped, tag = 'scoped memory for tpu_custom_call.1']
    #allocation5 [shape = 'u8[1024]{0}', space=vmem, size = 0x400, scoped, tag = 'output window, operand 0, single buffered']
    %6 = vsyncpa [#allocation3], 0
    %7 = vsyncpa [#allocation4], 0
    // Predicated region
    $region2: #{tpu_custom_call.1} parent=1 // pred_check
      _
    $region3: #{tpu_custom_call.1} parent=1 // pred_check_branch
      %9 = sbr.rel (0) target = $region5
    $region4: #{tpu_custom_call.1} parent=1 // pred_region
      %11 = vsyncadd [#allocation3], 0
      %s13 = sshll.u32 %s0, 4
      %s14 = int_to_ptr.hbm [resolvable:$true] %s13
      %s15 = sshll.u32 [#allocation2], 4
      %s16 = int_to_ptr.vmem [resolvable:$true] %s15
      %18 = dma.hbm_to_vmem [thread:$0]  %s14, 32, %s16, [#allocation3]
    $region5: #{tpu_custom_call.1} parent=1 // pred_fallthru
      _
    // Predicated region
    $region6: #{tpu_custom_call.1} parent=1 // pred_check
      _
    $region7: #{tpu_custom_call.1} parent=1 // pred_check_branch
      %20 = sbr.rel (0) target = $region9
    $region8: #{tpu_custom_call.1} parent=1 // pred_region
      %22 = dma.done [#allocation3], 32
    $region9: #{tpu_custom_call.1} parent=1 // pred_fallthru
      _
    %v23 = vld [vmem:[#allocation2] sm:$0x3]
    %vm24 = vcmask 25600
    %25 = vst.msk [vmem:[#allocation5] sm:$0x3] %vm24, %v23
    // Predicated region
    $region10: #{tpu_custom_call.1} parent=1 // pred_check
      _
    $region11: #{tpu_custom_call.1} parent=1 // pred_check_branch
      %27 = sbr.rel (0) target = $region13
    $region12: #{tpu_custom_call.1} parent=1 // pred_region
      %29 = vsyncadd [#allocation4], 0
      %s31 = sshll.u32 [#allocation5], 4
      %s32 = int_to_ptr.vmem [resolvable:$true] %s31
      %s33 = sshll.u32 %s1, 4
      %s34 = int_to_ptr.hbm [resolvable:$true] %s33
      %36 = dma.vmem_to_hbm [thread:$0]  %s32, 32, %s34, [#allocation4]
    $region13: #{tpu_custom_call.1} parent=1 // pred_fallthru
      _
    // Predicated region
    $region14: #{tpu_custom_call.1} parent=1 // pred_check
      _
    $region15: #{tpu_custom_call.1} parent=1 // pred_check_branch
      %38 = sbr.rel (0) target = $region17
    $region16: #{tpu_custom_call.1} parent=1 // pred_region
      %40 = dma.done [#allocation4], 32
    $region17: #{tpu_custom_call.1} parent=1 // pred_fallthru
      _
    %41 = vsyncpa [#allocation3], 1
    %42 = vsyncpa [#allocation4], 1

</llo_original>
